<compile_context>
chip_gen: v7x
topology: tpu7x:2x2x1
jax: 0.10.0
libtpu: 0.0.40
codegen_flags: <defaults>
</compile_context>

<pallas_src>
import jax
import jax.numpy as jnp
from jax.experimental import pallas as pl
from jax.experimental.pallas import tpu as pltpu

# ---------------- small config consistent with the module -------------------
B = 2            # batch
N = 8            # sequence length
DIM = 32         # model dim
HEADS = 4
DIM_HEAD = 16
INNER = HEADS * DIM_HEAD          # 64
SCALE = DIM_HEAD ** -0.5          # folded into q-projection weights at pack time


# ---------------- kernel: one batch element per grid step -------------------
def attention_kernel(x_ref,      # (1, N, DIM)      f32
                     wqkv_ref,   # (DIM, 3*INNER)   bf16, q columns pre-scaled
                     wo_ref,     # (INNER, DIM)     bf16
                     bo_ref,     # (1, DIM)         f32
                     o_ref):     # (1, N, DIM)      f32
    x = x_ref[0].astype(jnp.bfloat16)                          # (N, DIM)

    # Single wide QKV projection -> one MXU push (lane-dense 3*INNER output).
    qkv = jnp.dot(x, wqkv_ref[...],
                  preferred_element_type=jnp.float32)          # (N, 3*INNER) f32

    # Per-head attention. Head extraction is a static lane slice; per-head
    # score / AV matmuls are the same MXU push count as a batched einsum at
    # these shapes, while avoiding (N,H,DH)<->(H,N,DH) relayouts in-kernel.
    head_outs = []
    for h in range(HEADS):                                     # static unroll, H=4
        q_h = qkv[:, h * DIM_HEAD:(h + 1) * DIM_HEAD].astype(jnp.bfloat16)
        k_h = qkv[:, INNER + h * DIM_HEAD:
                     INNER + (h + 1) * DIM_HEAD].astype(jnp.bfloat16)
        v_h = qkv[:, 2 * INNER + h * DIM_HEAD:
                     2 * INNER + (h + 1) * DIM_HEAD].astype(jnp.bfloat16)

        # scores (scale already folded into q weights), softmax in f32
        dots = jnp.einsum('qd,kd->qk', q_h, k_h,
                          preferred_element_type=jnp.float32)  # (N, N)
        dots = dots - jnp.max(dots, axis=-1, keepdims=True)
        p = jnp.exp(dots)
        attn = p / jnp.sum(p, axis=-1, keepdims=True)

        head_outs.append(jnp.dot(attn.astype(jnp.bfloat16), v_h,
                                 preferred_element_type=jnp.float32))  # (N, DH)

    # Merge heads along lanes, then ONE output projection (to_out Linear).
    out = jnp.concatenate(head_outs, axis=-1).astype(jnp.bfloat16)     # (N, INNER)
    proj = jnp.dot(out, wo_ref[...],
                   preferred_element_type=jnp.float32) + bo_ref[...]   # (N, DIM)
    # nn.Dropout(p=0.0) in eval is the identity -> nothing to emit.
    o_ref[0] = proj.astype(o_ref.dtype)


# ---------------- parameter packing (one-time, outside the kernel) ----------
def pack_params(wqkv, wo, bo):
    """Weights stored as (in, out), i.e. y = x @ W.  Fold the attention scale
    into q and cast matmul weights to bf16 (lane-dense layouts)."""
    wq, wk, wv = jnp.split(wqkv, 3, axis=-1)                   # each (DIM, INNER)
    wqkv_packed = jnp.concatenate([wq * SCALE, wk, wv],
                                  axis=-1).astype(jnp.bfloat16)   # (DIM, 3*INNER)
    return wqkv_packed, wo.astype(jnp.bfloat16), bo.astype(jnp.float32)


# ---------------- single pallas_call for the Attention forward --------------
def attention_forward(x, wqkv, wo, bo):
    wqkv_p, wo_p, bo_p = pack_params(wqkv, wo, bo)
    return pl.pallas_call(
        attention_kernel,
        out_shape=jax.ShapeDtypeStruct((B, N, DIM), jnp.float32),
        grid_spec=pltpu.PrefetchScalarGridSpec(
            num_scalar_prefetch=0,
            grid=(B,),                                  # batch -> parallel grid axis
            in_specs=[
                pl.BlockSpec((1, N, DIM), lambda b: (b, 0, 0)),
                pl.BlockSpec(wqkv_p.shape, lambda b: (0, 0)),
                pl.BlockSpec(wo_p.shape, lambda b: (0, 0)),
                pl.BlockSpec(bo_p.shape, lambda b: (0, 0)),
            ],
            out_specs=pl.BlockSpec((1, N, DIM), lambda b: (b, 0, 0)),
        ),
        compiler_params=pltpu.CompilerParams(
            dimension_semantics=("parallel",)),         # uses both TCs on v7x
    )(x, wqkv_p, wo_p, bo_p)


# ---------------- pure-JAX reference (PyTorch Attention semantics) ----------
def ref_attention(x, wqkv, wo, bo):
    qkv = x @ wqkv                                              # (B, N, 3*INNER)
    q, k, v = jnp.split(qkv, 3, axis=-1)

    def split_heads(t):                                         # (B,N,INNER)->(B,H,N,DH)
        return t.reshape(B, N, HEADS, DIM_HEAD).transpose(0, 2, 1, 3)

    q, k, v = map(split_heads, (q, k, v))
    dots = jnp.einsum('bhqd,bhkd->bhqk', q, k) * SCALE
    attn = jax.nn.softmax(dots, axis=-1)
    out = jnp.einsum('bhqk,bhkd->bhqd', attn, v)
    out = out.transpose(0, 2, 1, 3).reshape(B, N, INNER)
    return out @ wo + bo                                        # to_out (dropout = id)


if __name__ == "__main__":
    key = jax.random.PRNGKey(0)
    kx, k1, k2, k3 = jax.random.split(key, 4)
    x = jax.random.normal(kx, (B, N, DIM), jnp.float32)
    wqkv = 0.02 * jax.random.normal(k1, (DIM, 3 * INNER), jnp.float32)  # to_qkv (no bias)
    wo = 0.02 * jax.random.normal(k2, (INNER, DIM), jnp.float32)        # to_out weight
    bo = 0.02 * jax.random.normal(k3, (1, DIM), jnp.float32)            # to_out bias

    out = jax.block_until_ready(attention_forward(x, wqkv, wo, bo))
    ref = jax.block_until_ready(ref_attention(x, wqkv, wo, bo))

    assert out.shape == (B, N, DIM)
    assert jnp.allclose(out, ref, atol=2e-3, rtol=2e-3), "mismatch vs reference"
    print("KERNEL_OK")
</pallas_src>

<mosaic_0001>
module attributes {stable_mosaic.version = 11 : i64} {
  func.func @attention_kernel(%arg0: i32, %arg1: memref<1x8x32xf32, #tpu.memory_space<vmem>>, %arg2: memref<32x192xbf16, #tpu.memory_space<vmem>>, %arg3: memref<64x32xbf16, #tpu.memory_space<vmem>>, %arg4: memref<1x32xf32, #tpu.memory_space<vmem>>, %arg5: memref<1x8x32xf32, #tpu.memory_space<vmem>>) attributes {dimension_semantics = [#tpu.dimension_semantics<parallel>], iteration_bounds = array<i64: 2>, scalar_prefetch = 0 : i64, scratch_operands = 0 : i64, tpu.core_type = #tpu.core_type<tc>, window_params = [{transform_indices = @transform_0, window_bounds = array<i64: 1, 8, 32>}, {pipeline_mode = #tpu.pipeline_mode<synchronous>, transform_indices = @transform_1, window_bounds = array<i64: 32, 192>}, {pipeline_mode = #tpu.pipeline_mode<synchronous>, transform_indices = @transform_2, window_bounds = array<i64: 64, 32>}, {pipeline_mode = #tpu.pipeline_mode<synchronous>, transform_indices = @transform_3, window_bounds = array<i64: 1, 32>}, {transform_indices = @transform_4, window_bounds = array<i64: 1, 8, 32>}]} {
    %c0 = arith.constant 0 : index
    %c0_0 = arith.constant 0 : index
    %c0_1 = arith.constant 0 : index
    %0 = vector.load %arg1[%c0, %c0_0, %c0_1] : memref<1x8x32xf32, #tpu.memory_space<vmem>>, vector<1x8x32xf32>
    %1 = vector.shape_cast %0 : vector<1x8x32xf32> to vector<8x32xf32>
    %2 = arith.truncf %1 : vector<8x32xf32> to vector<8x32xbf16>
    %c0_2 = arith.constant 0 : index
    %c0_3 = arith.constant 0 : index
    %3 = vector.load %arg2[%c0_2, %c0_3] : memref<32x192xbf16, #tpu.memory_space<vmem>>, vector<32x192xbf16>
    %cst = arith.constant dense<0.000000e+00> : vector<8x192xf32>
    %4 = tpu.matmul %2, %3, %cst {dimension_numbers = #tpu.dot_dimension_numbers<[1], [0], [0], [1], [0, 0, 1, 1], [], []>} : vector<8x32xbf16>, vector<32x192xbf16>, vector<8x192xf32> -> vector<8x192xf32>
    %5 = vector.extract_strided_slice %4 {offsets = [0, 0], sizes = [8, 16], strides = [1, 1]} : vector<8x192xf32> to vector<8x16xf32>
    %6 = arith.truncf %5 : vector<8x16xf32> to vector<8x16xbf16>
    %7 = vector.extract_strided_slice %4 {offsets = [0, 64], sizes = [8, 16], strides = [1, 1]} : vector<8x192xf32> to vector<8x16xf32>
    %8 = arith.truncf %7 : vector<8x16xf32> to vector<8x16xbf16>
    %9 = vector.extract_strided_slice %4 {offsets = [0, 128], sizes = [8, 16], strides = [1, 1]} : vector<8x192xf32> to vector<8x16xf32>
    %10 = arith.truncf %9 : vector<8x16xf32> to vector<8x16xbf16>
    "tpu.trace_start"() <{level = 10 : i32, message = "qd,kd->qk"}> : () -> ()
    %cst_4 = arith.constant dense<0.000000e+00> : vector<8x8xf32>
    %11 = tpu.matmul %6, %8, %cst_4 {dimension_numbers = #tpu.dot_dimension_numbers<[1], [1], [0], [0], [0, 0, 1, 0], [], []>} : vector<8x16xbf16>, vector<8x16xbf16>, vector<8x8xf32> -> vector<8x8xf32>
    "tpu.trace_stop"() : () -> ()
    %cst_5 = arith.constant dense<0xFF800000> : vector<8xf32>
    %12 = vector.multi_reduction <maximumf>, %11, %cst_5 [1] : vector<8x8xf32> to vector<8xf32>
    %13 = vector.shape_cast %12 : vector<8xf32> to vector<8x1xf32>
    %14 = vector.broadcast %13 : vector<8x1xf32> to vector<8x8xf32>
    %15 = arith.subf %11, %14 : vector<8x8xf32>
    %16 = math.exp %15 : vector<8x8xf32>
    %cst_6 = arith.constant dense<0.000000e+00> : vector<8xf32>
    %17 = vector.multi_reduction <add>, %16, %cst_6 [1] : vector<8x8xf32> to vector<8xf32>
    %18 = vector.shape_cast %17 : vector<8xf32> to vector<8x1xf32>
    %19 = vector.broadcast %18 : vector<8x1xf32> to vector<8x8xf32>
    %20 = arith.divf %16, %19 : vector<8x8xf32>
    %21 = arith.truncf %20 : vector<8x8xf32> to vector<8x8xbf16>
    %cst_7 = arith.constant dense<0.000000e+00> : vector<8x16xf32>
    %22 = tpu.matmul %21, %10, %cst_7 {dimension_numbers = #tpu.dot_dimension_numbers<[1], [0], [0], [1], [0, 0, 1, 1], [], []>} : vector<8x8xbf16>, vector<8x16xbf16>, vector<8x16xf32> -> vector<8x16xf32>
    %23 = vector.extract_strided_slice %4 {offsets = [0, 16], sizes = [8, 16], strides = [1, 1]} : vector<8x192xf32> to vector<8x16xf32>
    %24 = arith.truncf %23 : vector<8x16xf32> to vector<8x16xbf16>
    %25 = vector.extract_strided_slice %4 {offsets = [0, 80], sizes = [8, 16], strides = [1, 1]} : vector<8x192xf32> to vector<8x16xf32>
    %26 = arith.truncf %25 : vector<8x16xf32> to vector<8x16xbf16>
    %27 = vector.extract_strided_slice %4 {offsets = [0, 144], sizes = [8, 16], strides = [1, 1]} : vector<8x192xf32> to vector<8x16xf32>
    %28 = arith.truncf %27 : vector<8x16xf32> to vector<8x16xbf16>
    "tpu.trace_start"() <{level = 10 : i32, message = "qd,kd->qk"}> : () -> ()
    %cst_8 = arith.constant dense<0.000000e+00> : vector<8x8xf32>
    %29 = tpu.matmul %24, %26, %cst_8 {dimension_numbers = #tpu.dot_dimension_numbers<[1], [1], [0], [0], [0, 0, 1, 0], [], []>} : vector<8x16xbf16>, vector<8x16xbf16>, vector<8x8xf32> -> vector<8x8xf32>
    "tpu.trace_stop"() : () -> ()
    %cst_9 = arith.constant dense<0xFF800000> : vector<8xf32>
    %30 = vector.multi_reduction <maximumf>, %29, %cst_9 [1] : vector<8x8xf32> to vector<8xf32>
    %31 = vector.shape_cast %30 : vector<8xf32> to vector<8x1xf32>
    %32 = vector.broadcast %31 : vector<8x1xf32> to vector<8x8xf32>
    %33 = arith.subf %29, %32 : vector<8x8xf32>
    %34 = math.exp %33 : vector<8x8xf32>
    %cst_10 = arith.constant dense<0.000000e+00> : vector<8xf32>
    %35 = vector.multi_reduction <add>, %34, %cst_10 [1] : vector<8x8xf32> to vector<8xf32>
    %36 = vector.shape_cast %35 : vector<8xf32> to vector<8x1xf32>
    %37 = vector.broadcast %36 : vector<8x1xf32> to vector<8x8xf32>
    %38 = arith.divf %34, %37 : vector<8x8xf32>
    %39 = arith.truncf %38 : vector<8x8xf32> to vector<8x8xbf16>
    %cst_11 = arith.constant dense<0.000000e+00> : vector<8x16xf32>
    %40 = tpu.matmul %39, %28, %cst_11 {dimension_numbers = #tpu.dot_dimension_numbers<[1], [0], [0], [1], [0, 0, 1, 1], [], []>} : vector<8x8xbf16>, vector<8x16xbf16>, vector<8x16xf32> -> vector<8x16xf32>
    %41 = vector.extract_strided_slice %4 {offsets = [0, 32], sizes = [8, 16], strides = [1, 1]} : vector<8x192xf32> to vector<8x16xf32>
    %42 = arith.truncf %41 : vector<8x16xf32> to vector<8x16xbf16>
    %43 = vector.extract_strided_slice %4 {offsets = [0, 96], sizes = [8, 16], strides = [1, 1]} : vector<8x192xf32> to vector<8x16xf32>
    %44 = arith.truncf %43 : vector<8x16xf32> to vector<8x16xbf16>
    %45 = vector.extract_strided_slice %4 {offsets = [0, 160], sizes = [8, 16], strides = [1, 1]} : vector<8x192xf32> to vector<8x16xf32>
    %46 = arith.truncf %45 : vector<8x16xf32> to vector<8x16xbf16>
    "tpu.trace_start"() <{level = 10 : i32, message = "qd,kd->qk"}> : () -> ()
    %cst_12 = arith.constant dense<0.000000e+00> : vector<8x8xf32>
    %47 = tpu.matmul %42, %44, %cst_12 {dimension_numbers = #tpu.dot_dimension_numbers<[1], [1], [0], [0], [0, 0, 1, 0], [], []>} : vector<8x16xbf16>, vector<8x16xbf16>, vector<8x8xf32> -> vector<8x8xf32>
    "tpu.trace_stop"() : () -> ()
    %cst_13 = arith.constant dense<0xFF800000> : vector<8xf32>
    %48 = vector.multi_reduction <maximumf>, %47, %cst_13 [1] : vector<8x8xf32> to vector<8xf32>
    %49 = vector.shape_cast %48 : vector<8xf32> to vector<8x1xf32>
    %50 = vector.broadcast %49 : vector<8x1xf32> to vector<8x8xf32>
    %51 = arith.subf %47, %50 : vector<8x8xf32>
    %52 = math.exp %51 : vector<8x8xf32>
    %cst_14 = arith.constant dense<0.000000e+00> : vector<8xf32>
    %53 = vector.multi_reduction <add>, %52, %cst_14 [1] : vector<8x8xf32> to vector<8xf32>
    %54 = vector.shape_cast %53 : vector<8xf32> to vector<8x1xf32>
    %55 = vector.broadcast %54 : vector<8x1xf32> to vector<8x8xf32>
    %56 = arith.divf %52, %55 : vector<8x8xf32>
    %57 = arith.truncf %56 : vector<8x8xf32> to vector<8x8xbf16>
    %cst_15 = arith.constant dense<0.000000e+00> : vector<8x16xf32>
    %58 = tpu.matmul %57, %46, %cst_15 {dimension_numbers = #tpu.dot_dimension_numbers<[1], [0], [0], [1], [0, 0, 1, 1], [], []>} : vector<8x8xbf16>, vector<8x16xbf16>, vector<8x16xf32> -> vector<8x16xf32>
    %59 = vector.extract_strided_slice %4 {offsets = [0, 48], sizes = [8, 16], strides = [1, 1]} : vector<8x192xf32> to vector<8x16xf32>
    %60 = arith.truncf %59 : vector<8x16xf32> to vector<8x16xbf16>
    %61 = vector.extract_strided_slice %4 {offsets = [0, 112], sizes = [8, 16], strides = [1, 1]} : vector<8x192xf32> to vector<8x16xf32>
    %62 = arith.truncf %61 : vector<8x16xf32> to vector<8x16xbf16>
    %63 = vector.extract_strided_slice %4 {offsets = [0, 176], sizes = [8, 16], strides = [1, 1]} : vector<8x192xf32> to vector<8x16xf32>
    %64 = arith.truncf %63 : vector<8x16xf32> to vector<8x16xbf16>
    "tpu.trace_start"() <{level = 10 : i32, message = "qd,kd->qk"}> : () -> ()
    %cst_16 = arith.constant dense<0.000000e+00> : vector<8x8xf32>
    %65 = tpu.matmul %60, %62, %cst_16 {dimension_numbers = #tpu.dot_dimension_numbers<[1], [1], [0], [0], [0, 0, 1, 0], [], []>} : vector<8x16xbf16>, vector<8x16xbf16>, vector<8x8xf32> -> vector<8x8xf32>
    "tpu.trace_stop"() : () -> ()
    %cst_17 = arith.constant dense<0xFF800000> : vector<8xf32>
    %66 = vector.multi_reduction <maximumf>, %65, %cst_17 [1] : vector<8x8xf32> to vector<8xf32>
    %67 = vector.shape_cast %66 : vector<8xf32> to vector<8x1xf32>
    %68 = vector.broadcast %67 : vector<8x1xf32> to vector<8x8xf32>
    %69 = arith.subf %65, %68 : vector<8x8xf32>
    %70 = math.exp %69 : vector<8x8xf32>
    %cst_18 = arith.constant dense<0.000000e+00> : vector<8xf32>
    %71 = vector.multi_reduction <add>, %70, %cst_18 [1] : vector<8x8xf32> to vector<8xf32>
    %72 = vector.shape_cast %71 : vector<8xf32> to vector<8x1xf32>
    %73 = vector.broadcast %72 : vector<8x1xf32> to vector<8x8xf32>
    %74 = arith.divf %70, %73 : vector<8x8xf32>
    %75 = arith.truncf %74 : vector<8x8xf32> to vector<8x8xbf16>
    %cst_19 = arith.constant dense<0.000000e+00> : vector<8x16xf32>
    %76 = tpu.matmul %75, %64, %cst_19 {dimension_numbers = #tpu.dot_dimension_numbers<[1], [0], [0], [1], [0, 0, 1, 1], [], []>} : vector<8x8xbf16>, vector<8x16xbf16>, vector<8x16xf32> -> vector<8x16xf32>
    %77 = tpu.concatenate %22, %40, %58, %76 in 1 : vector<8x16xf32>, vector<8x16xf32>, vector<8x16xf32>, vector<8x16xf32> -> vector<8x64xf32>
    %78 = arith.truncf %77 : vector<8x64xf32> to vector<8x64xbf16>
    %c0_20 = arith.constant 0 : index
    %c0_21 = arith.constant 0 : index
    %79 = vector.load %arg3[%c0_20, %c0_21] : memref<64x32xbf16, #tpu.memory_space<vmem>>, vector<64x32xbf16>
    %cst_22 = arith.constant dense<0.000000e+00> : vector<8x32xf32>
    %80 = tpu.matmul %78, %79, %cst_22 {dimension_numbers = #tpu.dot_dimension_numbers<[1], [0], [0], [1], [0, 0, 1, 1], [], []>} : vector<8x64xbf16>, vector<64x32xbf16>, vector<8x32xf32> -> vector<8x32xf32>
    %c0_23 = arith.constant 0 : index
    %c0_24 = arith.constant 0 : index
    %81 = vector.load %arg4[%c0_23, %c0_24] : memref<1x32xf32, #tpu.memory_space<vmem>>, vector<1x32xf32>
    %82 = vector.broadcast %81 : vector<1x32xf32> to vector<8x32xf32>
    %83 = arith.addf %80, %82 : vector<8x32xf32>
    %c0_25 = arith.constant 0 : index
    %c0_26 = arith.constant 0 : index
    %c0_27 = arith.constant 0 : index
    %84 = vector.load %arg5[%c0_25, %c0_26, %c0_27] : memref<1x8x32xf32, #tpu.memory_space<vmem>>, vector<1x8x32xf32>
    %85 = vector.shape_cast %84 : vector<1x8x32xf32> to vector<8x32xf32>
    %86 = vector.shape_cast %83 : vector<8x32xf32> to vector<1x8x32xf32>
    tpu.vector_store %arg5[%c0_25, %c0_26, %c0_27], %86 {strides = array<i32>} : memref<1x8x32xf32, #tpu.memory_space<vmem>>, vector<1x8x32xf32>,
    return
  }
  func.func @transform_0(%arg0: i32) -> (i32, i32, i32) {
    %c0_i32 = arith.constant 0 : i32
    %c0_i32_0 = arith.constant 0 : i32
    %c0_i32_1 = arith.constant 0 : i32
    return %arg0, %c0_i32, %c0_i32_0 : i32, i32, i32
  }
  func.func @transform_1(%arg0: i32) -> (i32, i32) {
    %c0_i32 = arith.constant 0 : i32
    %c0_i32_0 = arith.constant 0 : i32
    %c0_i32_1 = arith.constant 0 : i32
    return %c0_i32, %c0_i32_0 : i32, i32
  }
  func.func @transform_2(%arg0: i32) -> (i32, i32) {
    %c0_i32 = arith.constant 0 : i32
    %c0_i32_0 = arith.constant 0 : i32
    %c0_i32_1 = arith.constant 0 : i32
    return %c0_i32, %c0_i32_0 : i32, i32
  }
  func.func @transform_3(%arg0: i32) -> (i32, i32) {
    %c0_i32 = arith.constant 0 : i32
    %c0_i32_0 = arith.constant 0 : i32
    %c0_i32_1 = arith.constant 0 : i32
    return %c0_i32, %c0_i32_0 : i32, i32
  }
  func.func @transform_4(%arg0: i32) -> (i32, i32, i32) {
    %c0_i32 = arith.constant 0 : i32
    %c0_i32_0 = arith.constant 0 : i32
    %c0_i32_1 = arith.constant 0 : i32
    return %arg0, %c0_i32, %c0_i32_0 : i32, i32, i32
  }
}

</mosaic_0001>

<llo_original>
// kernel: tpu_custom_call.1
$region0: #{tpu_custom_call.1}
  #allocation0 [shape = 'u32[]', space=smem, size = 0x4, offset = 0x4, fixed_abs, tag = 'smem constant byte address 0x4 - core index']
  #allocation1 [shape = 'u32[144,128]{1,0:T(1,128)}', space=vmem, size = 0x12000, scoped, tag = 'internal scratch']
  %s0 = inlined_call_operand.vmem [shape: f32[2,8,32], index: 0, kind: input, shape index: {}]
  %s1 = inlined_call_operand.vmem [shape: bf16[32,192], index: 1, kind: input, shape index: {}]
  %s2 = inlined_call_operand.vmem [shape: bf16[64,32], index: 2, kind: input, shape index: {}]
  %s3 = inlined_call_operand.vmem [shape: f32[1,32], index: 3, kind: input, shape index: {}]
  %s4 = inlined_call_operand.hbm [shape: f32[2,8,32], index: 4, kind: output, shape index: {}]
  %s5 = sld [smem:[#allocation0]]
  $region49: #{tpu_custom_call.1} parent=0
    _
  %s7 = ssub.s32 1, %s5
  %s8 = scalar_select 0, %s7, %s5
  $region1: #{tpu_custom_call.1} parent=0
    #allocation2 [shape = 'u8[8192]{0}', space=vmem, size = 0x2000, scoped, tag = 'output window, operand 0']
    #allocation3 [shape = 's32[2]{0}', space=sflag, size = 0x8, scoped, tag = 'scoped memory for tpu_custom_call.1']
    %9 = vsyncpa [#allocation3], 0
    %s10 = scalar_lea.sflag [#allocation3], 1
    %11 = vsyncpa %s10, 0
    loop: start=0, step=1, limit=4
    $region2: #{tpu_custom_call.1} parent=1 // loop_pre_header
      _
    $region3: #{tpu_custom_call.1} parent=1 // loop_header
      %s13 = sphi 0, %s17
      %p14 = scmp.ge.s32.totalorder %s13, 4
      %s23 = sphi 0, %s25
      %s26 = sphi 0, %s23
      %s27 = sphi 0, %s26
      %s43 = sphi 0, %s27
      %s47 = sphi 0, %s47
      %s49 = sphi 0, %s47
      %s50 = sphi 0, %s49
      %s64 = sphi 0, %s50
      %s68 = sphi 0, %s68
      %s70 = sphi 0, %s68
      %s71 = sphi 0, %s70
      %s85 = sphi 0, %s71
      %s89 = sphi 0, %s89
      %s91 = sphi 0, %s89
      %s92 = sphi 0, %s91
      %s106 = sphi 0, %s92
      %s112 = sphi 0, %s114
      %s115 = sphi 0, %s112
      %s116 = sphi 0, %s115
      %s132 = sphi 0, %s116
    $region4: #{tpu_custom_call.1} parent=1 // loop_header_branch
      %16 = sbr.rel (%p14) target = $region8
    $region5: #{tpu_custom_call.1} parent=1 // loop_body
      %s18 = ssub.s32 %s13, 1
      %s19 = ssub.s32 %s13, 2
      %s20 = sadd.s32 %s13, 1
      %s21 = ssub.s32 %s13, %s20
      %p22 = scmp.eq.s32.totalorder %s21, 0
      %s24 = sadd.s32 %s23, 1
      %s25 = scalar_select %p22, %s23, %s24
      %p28 = pneg %p22
      %p29 = scmp.eq.s32.totalorder %s13, 1
      %p30 = por %p28, %p29
      %p31 = scmp.ne.s32.totalorder %s23, %s26
      %p32 = scmp.eq.s32.totalorder %s13, 0
      %p33 = por %p31, %p32
      %p34 = scmp.ne.s32.totalorder %s23, %s26
      %p35 = scmp.eq.s32.totalorder %s18, 1
      %p36 = por %p34, %p35
      %p37 = scmp.ne.s32.totalorder %s26, %s27
      %p38 = scmp.eq.s32.totalorder %s18, 0
      %p39 = por %p37, %p38
      %p40 = scmp.ne.s32.totalorder %s26, %s27
      %p41 = scmp.eq.s32.totalorder %s19, 1
      %p42 = por %p40, %p41
      %p44 = scmp.ne.s32.totalorder %s27, %s43
      %p45 = scmp.eq.s32.totalorder %s19, 0
      %p46 = por %p44, %p45
      %s48 = sadd.s32 %s47, 1
      %p51 = scmp.eq.s32.totalorder %s13, 1
      %p52 = scmp.ne.s32.totalorder %s47, %s49
      %p53 = scmp.eq.s32.totalorder %s13, 0
      %p54 = por %p52, %p53
      %p55 = scmp.ne.s32.totalorder %s47, %s49
      %p56 = scmp.eq.s32.totalorder %s18, 1
      %p57 = por %p55, %p56
      %p58 = scmp.ne.s32.totalorder %s49, %s50
      %p59 = scmp.eq.s32.totalorder %s18, 0
      %p60 = por %p58, %p59
      %p61 = scmp.ne.s32.totalorder %s49, %s50
      %p62 = scmp.eq.s32.totalorder %s19, 1
      %p63 = por %p61, %p62
      %p65 = scmp.ne.s32.totalorder %s50, %s64
      %p66 = scmp.eq.s32.totalorder %s19, 0
      %p67 = por %p65, %p66
      %s69 = sadd.s32 %s68, 1
      %p72 = scmp.eq.s32.totalorder %s13, 1
      %p73 = scmp.ne.s32.totalorder %s68, %s70
      %p74 = scmp.eq.s32.totalorder %s13, 0
      %p75 = por %p73, %p74
      %p76 = scmp.ne.s32.totalorder %s68, %s70
      %p77 = scmp.eq.s32.totalorder %s18, 1
      %p78 = por %p76, %p77
      %p79 = scmp.ne.s32.totalorder %s70, %s71
      %p80 = scmp.eq.s32.totalorder %s18, 0
      %p81 = por %p79, %p80
      %p82 = scmp.ne.s32.totalorder %s70, %s71
      %p83 = scmp.eq.s32.totalorder %s19, 1
      %p84 = por %p82, %p83
      %p86 = scmp.ne.s32.totalorder %s71, %s85
      %p87 = scmp.eq.s32.totalorder %s19, 0
      %p88 = por %p86, %p87
      %s90 = sadd.s32 %s89, 1
      %p93 = scmp.eq.s32.totalorder %s13, 1
      %p94 = scmp.ne.s32.totalorder %s89, %s91
      %p95 = scmp.eq.s32.totalorder %s13, 0
      %p96 = por %p94, %p95
      %p97 = scmp.ne.s32.totalorder %s89, %s91
      %p98 = scmp.eq.s32.totalorder %s18, 1
      %p99 = por %p97, %p98
      %p100 = scmp.ne.s32.totalorder %s91, %s92
      %p101 = scmp.eq.s32.totalorder %s18, 0
      %p102 = por %p100, %p101
      %p103 = scmp.ne.s32.totalorder %s91, %s92
      %p104 = scmp.eq.s32.totalorder %s19, 1
      %p105 = por %p103, %p104
      %p107 = scmp.ne.s32.totalorder %s92, %s106
      %p108 = scmp.eq.s32.totalorder %s19, 0
      %p109 = por %p107, %p108
      %s110 = ssub.s32 %s13, %s20
      %p111 = scmp.eq.s32.totalorder %s110, 0
      %s113 = sadd.s32 %s112, 1
      %s114 = scalar_select %p111, %s112, %s113
      %p117 = pneg %p111
      %p118 = scmp.eq.s32.totalorder %s13, 1
      %p119 = por %p117, %p118
      %p120 = scmp.ne.s32.totalorder %s112, %s115
      %p121 = scmp.eq.s32.totalorder %s13, 0
      %p122 = por %p120, %p121
      %p123 = scmp.ne.s32.totalorder %s112, %s115
      %p124 = scmp.eq.s32.totalorder %s18, 1
      %p125 = por %p123, %p124
      %p126 = scmp.ne.s32.totalorder %s115, %s116
      %p127 = scmp.eq.s32.totalorder %s18, 0
      %p128 = por %p126, %p127
      %p129 = scmp.ne.s32.totalorder %s115, %s116
      %p130 = scmp.eq.s32.totalorder %s19, 1
      %p131 = por %p129, %p130
      %p133 = scmp.ne.s32.totalorder %s116, %s132
      %p134 = scmp.eq.s32.totalorder %s19, 0
      %p135 = por %p133, %p134
      %p136 = scmp.le.s32.totalorder 1, %s13
      %p137 = scmp.lt.s32.totalorder %s13, 3
      %p138 = pnand %p136, %p137
      %p139 = pneg %p138
      // Predicated region
      $region9: #{tpu_custom_call.1} parent=5 // pred_check
        _
      $region10: #{tpu_custom_call.1} parent=5 // pred_check_branch
        %141 = sbr.rel (%p138) target = $region12
      $region11: #{tpu_custom_call.1} parent=5 // pred_region
        %s142 = ssub.s32 %s13, 1
        // Predicated region
        $region13: #{tpu_custom_call.1} parent=11 // pred_check
          %p143 = pneg %p60
        $region14: #{tpu_custom_call.1} parent=11 // pred_check_branch
          %145 = sbr.rel (%p143) target = $region16
        $region15: #{tpu_custom_call.1} parent=11 // pred_region
          _
        $region16: #{tpu_custom_call.1} parent=11 // pred_fallthru
          _
        // Predicated region
        $region17: #{tpu_custom_call.1} parent=11 // pred_check
          %p146 = pneg %p81
        $region18: #{tpu_custom_call.1} parent=11 // pred_check_branch
          %148 = sbr.rel (%p146) target = $region20
        $region19: #{tpu_custom_call.1} parent=11 // pred_region
          _
        $region20: #{tpu_custom_call.1} parent=11 // pred_fallthru
          _
        // Predicated region
        $region21: #{tpu_custom_call.1} parent=11 // pred_check
          %p149 = pneg %p102
        $region22: #{tpu_custom_call.1} parent=11 // pred_check_branch
          %151 = sbr.rel (%p149) target = $region24
        $region23: #{tpu_custom_call.1} parent=11 // pred_region
          _
        $region24: #{tpu_custom_call.1} parent=11 // pred_fallthru
          _
      $region12: #{tpu_custom_call.1} parent=5 // pred_fallthru
        _
      %p152 = scmp.lt.s32.totalorder %s13, 2
      // Predicated region
      $region25: #{tpu_custom_call.1} parent=5 // pred_check
        %p153 = pneg %p152
      $region26: #{tpu_custom_call.1} parent=5 // pred_check_branch
        %155 = sbr.rel (%p153) target = $region28
      $region27: #{tpu_custom_call.1} parent=5 // pred_region
        // Predicated region
        $region29: #{tpu_custom_call.1} parent=27 // pred_check
          %p156 = pneg %p33
        $region30: #{tpu_custom_call.1} parent=27 // pred_check_branch
          %158 = sbr.rel (%p156) target = $region32
        $region31: #{tpu_custom_call.1} parent=27 // pred_region
          %p159 = scmp.lt.s32.totalorder %s13, 1
          %s160 = scalar_select %p159, %s13, 1
          %s161 = smul.addr %s160, 8
          %s162 = scalar_lea.vmem %s0, %s161
        $region32: #{tpu_custom_call.1} parent=27 // pred_fallthru
          _
      $region28: #{tpu_custom_call.1} parent=5 // pred_fallthru
        _
      %p163 = scmp.le.s32.totalorder 1, %s13
      %p164 = scmp.lt.s32.totalorder %s13, 3
      %p165 = pnand %p163, %p164
      %p166 = pneg %p165
      // Predicated region
      $region33: #{tpu_custom_call.1} parent=5 // pred_check
        _
      $region34: #{tpu_custom_call.1} parent=5 // pred_check_branch
        %168 = sbr.rel (%p165) target = $region36
      $region35: #{tpu_custom_call.1} parent=5 // pred_region
        %s169 = ssub.s32 %s13, 1
        %p170 = scmp.lt.s32.totalorder %s18, 1
        %s171 = scalar_select %p170, %s18, 1
        %s172 = smul.addr %s171, 8
        %s173 = scalar_lea.vmem %s0, %s172
        %p174 = pneg %p39
        %p175 = pneg %p36
        %p176 = pneg %p60
        %p177 = pneg %p57
        %p178 = pneg %p81
        %p179 = pneg %p78
        %p180 = pneg %p102
        %p181 = pneg %p99
        %p182 = pneg %p128
        %p183 = pneg %p125
        %s184 = sand.u32 %s115, 1
        %s185 = scalar_lea.sflag [#allocation3], %s184
        %s186 = sand.u32 %s115, 1
        %s187 = smul.addr %s186, 8
        %s188 = scalar_lea.vmem [#allocation2], %s187
        %p189 = scmp.lt.s32.totalorder %s18, 1
        %s190 = scalar_select %p189, %s18, 1
        %s191 = smul.addr %s190, 8
        %s192 = scalar_lea.vmem %s0, %s191
        %v194 = vld [vmem:[%s192] sm:$0xff]
        %v195 = vpack.c.bf16 %v194, %v194
        %v196 = vld [vmem:[%s1] sm:$0xff]
        %v197 = vld [vmem:[%s1 + $0x8] sm:$0xff]
        %v198 = vld [vmem:[%s1 + $0x10] sm:$0xff]
        %v199 = vld [vmem:[%s1 + $0x18] sm:$0xff]
        %v204 = vunpack.c.l.b16 %v196
        %v205 = vunpack.c.h.b16 %v196
        %v206 = vunpack.c.l.b16 %v197
        %v207 = vunpack.c.h.b16 %v197
        %v208 = vunpack.c.l.b16 %v198
        %v209 = vunpack.c.h.b16 %v198
        %v210 = vunpack.c.l.b16 %v199
        %v211 = vunpack.c.h.b16 %v199
        %v212 = vpack.c.b16 %v206, %v204
        %v213 = vpack.c.b16 %v207, %v205
        %v214 = vpack.c.b16 %v210, %v208
        %v215 = vpack.c.b16 %v211, %v209
        %vm220 = vcmask 261120
        %v222 = vsel %vm220, %v195, 0
        %224 = vmatprep.subr.bf16.mxu0 %v213
        %225 = vmatpush1.bf16.msra.mxu0 %v212
        %226 = vmatprep.subr.bf16.mxu0 %v215
        %227 = vmatpush1.bf16.msra.mxu0 %v214
        %228 = vmatprep.subr.bf16.mxu0 0
        %229 = vmatpush1.bf16.msra.mxu0 0
        %230 = vmatprep.subr.bf16.mxu0 0
        %231 = vmatpush1.bf16.msra.mxu0 0
        %232 = vmatprep.subr.bf16.mxu0 0
        %233 = vmatpush1.bf16.msra.mxu0 0
        %234 = vmatprep.subr.bf16.mxu0 0
        %235 = vmatpush1.bf16.msra.mxu0 0
        %236 = vmatprep.subr.bf16.mxu0 0
        %237 = vmatpush1.bf16.msra.mxu0 0
        %238 = vmatprep.subr.bf16.mxu0 0
        %239 = vmatpush1.bf16.msra.mxu0 0
        %240 = vmatprep.subr.bf16.mxu0 0
        %241 = vmatpush1.bf16.msra.mxu0 0
        %242 = vmatprep.subr.bf16.mxu0 0
        %243 = vmatpush1.bf16.msra.mxu0 0
        %244 = vmatprep.subr.bf16.mxu0 0
        %245 = vmatpush1.bf16.msra.mxu0 0
        %246 = vmatprep.subr.bf16.mxu0 0
        %247 = vmatpush1.bf16.msra.mxu0 0
        %248 = vmatprep.subr.bf16.mxu0 0
        %249 = vmatpush1.bf16.msra.mxu0 0
        %250 = vmatprep.subr.bf16.mxu0 0
        %251 = vmatpush1.bf16.msra.mxu0 0
        %252 = vmatprep.subr.bf16.mxu0 0
        %253 = vmatpush1.bf16.msra.mxu0 0
        %254 = vmatprep.subr.bf16.mxu0 0
        %255 = vmatpush1.bf16.msra.mxu0 0
        %256 = vmatprep.mubr.bf16.mxu0 0
        %257 = vmatmul.mubr.bf16.gmra.mrb[0].mxu0 %v222
        %v258 = vpop.f32.mrb[0].mxu0
        %v259 = vadd.f32 0.0, %v258
        %v260 = vpop.f32.mrb[0].mxu0
        %v261 = vadd.f32 0.0, %v260
        %v262 = vpop.f32.mrb[0].mxu0
        %v263 = vpop.f32.mrb[0].mxu0
        %264 = vdwg.mxu0
        %v265 = vpack.c.bf16 %v259, %v259
        %v266 = vpack.c.bf16 %v261, %v261
        %268 = vrot.lane.b32.xlu0 %v265, 64
        %v269 = vpop.permute.xlu0 %268
        %vm270 = vcmask 130048
        %v272 = vsel %vm270, %v265, 0
        %v275 = vsel %vm270, %v269, 0
        %277 = vmatprep.subr.bf16.mxu0 0
        %278 = vmatpush1.bf16.xpose.msra.mxu0 %v275
        %279 = vmatprep.subr.bf16.mxu0 0
        %280 = vmatpush1.bf16.xpose.msra.mxu0 0
        %281 = vmatprep.subr.bf16.mxu0 0
        %282 = vmatpush1.bf16.xpose.msra.mxu0 0
        %283 = vmatprep.subr.bf16.mxu0 0
        %284 = vmatpush1.bf16.xpose.msra.mxu0 0
        %285 = vmatprep.subr.bf16.mxu0 0
        %286 = vmatpush1.bf16.xpose.msra.mxu0 0
        %287 = vmatprep.subr.bf16.mxu0 0
        %288 = vmatpush1.bf16.xpose.msra.mxu0 0
        %289 = vmatprep.subr.bf16.mxu0 0
        %290 = vmatpush1.bf16.xpose.msra.mxu0 0
        %291 = vmatprep.subr.bf16.mxu0 0
        %292 = vmatpush1.bf16.xpose.msra.mxu0 0
        %293 = vmatprep.subr.bf16.mxu0 0
        %294 = vmatpush1.bf16.xpose.msra.mxu0 0
        %295 = vmatprep.subr.bf16.mxu0 0
        %296 = vmatpush1.bf16.xpose.msra.mxu0 0
        %297 = vmatprep.subr.bf16.mxu0 0
        %298 = vmatpush1.bf16.xpose.msra.mxu0 0
        %299 = vmatprep.subr.bf16.mxu0 0
        %300 = vmatpush1.bf16.xpose.msra.mxu0 0
        %301 = vmatprep.subr.bf16.mxu0 0
        %302 = vmatpush1.bf16.xpose.msra.mxu0 0
        %303 = vmatprep.subr.bf16.mxu0 0
        %304 = vmatpush1.bf16.xpose.msra.mxu0 0
        %305 = vmatprep.subr.bf16.mxu0 0
        %306 = vmatpush1.bf16.xpose.msra.mxu0 0
        %307 = vmatprep.subr.bf16.mxu0 0
        %308 = vmatpush1.bf16.xpose.msra.mxu0 0
        %309 = vmatprep.mubr.bf16.mxu0 0
        %310 = vmatmul.mubr.bf16.gmra.mrb[0].mxu0 %v272
        %v311 = vpop.f32.mrb[0].mxu0
        %v312 = vadd.f32 0.0, %v311
        %v313 = vpop.f32.mrb[0].mxu0
        %v314 = vpop.f32.mrb[0].mxu0
        %v315 = vpop.f32.mrb[0].mxu0
        %316 = vdwg.mxu0
        %vm317 = vcmask 64512
        %v318 = vsel %vm317, %v312, -inf
        %319 = vmax.xlane.f32.xlu0 %v318
        %v320 = vpop.xlane.xlu0 %319
        %v321 = vsub.f32 %v312, %v320
        %v322 = vmul.f32 %v321, 1.442695
        %v323 = vpow.pop %v322
        %v324 = vsel %vm317, %v323, 0.0
        %325 = vadd.xlane.f32.xlu0 %v324
        %v326 = vpop.xlane.xlu0 %325
        %v327 = vrcp.pop %v326
        %v328 = vmul.f32 %v323, %v327
        %v329 = vpack.c.bf16 %v328, %v328
        %v331 = vsel %vm317, %v329, 0
        %vm333 = vcmask 1043456
        %v335 = vsel %vm333, %v266, 0
        %337 = vmatprep.subr.bf16.mxu0 0
        %338 = vmatpush1.bf16.msra.mxu0 %v335
        %339 = vmatprep.subr.bf16.mxu0 0
        %340 = vmatpush1.bf16.msra.mxu0 0
        %341 = vmatprep.subr.bf16.mxu0 0
        %342 = vmatpush1.bf16.msra.mxu0 0
        %343 = vmatprep.subr.bf16.mxu0 0
        %344 = vmatpush1.bf16.msra.mxu0 0
        %345 = vmatprep.subr.bf16.mxu0 0
        %346 = vmatpush1.bf16.msra.mxu0 0
        %347 = vmatprep.subr.bf16.mxu0 0
        %348 = vmatpush1.bf16.msra.mxu0 0
        %349 = vmatprep.subr.bf16.mxu0 0
        %350 = vmatpush1.bf16.msra.mxu0 0
        %351 = vmatprep.subr.bf16.mxu0 0
        %352 = vmatpush1.bf16.msra.mxu0 0
        %353 = vmatprep.subr.bf16.mxu0 0
        %354 = vmatpush1.bf16.msra.mxu0 0
        %355 = vmatprep.subr.bf16.mxu0 0
        %356 = vmatpush1.bf16.msra.mxu0 0
        %357 = vmatprep.subr.bf16.mxu0 0
        %358 = vmatpush1.bf16.msra.mxu0 0
        %359 = vmatprep.subr.bf16.mxu0 0
        %360 = vmatpush1.bf16.msra.mxu0 0
        %361 = vmatprep.subr.bf16.mxu0 0
        %362 = vmatpush1.bf16.msra.mxu0 0
        %363 = vmatprep.subr.bf16.mxu0 0
        %364 = vmatpush1.bf16.msra.mxu0 0
        %365 = vmatprep.subr.bf16.mxu0 0
        %366 = vmatpush1.bf16.msra.mxu0 0
        %367 = vmatprep.subr.bf16.mxu0 0
        %368 = vmatpush1.bf16.msra.mxu0 0
        %369 = vmatprep.mubr.bf16.mxu0 0
        %370 = vmatmul.mubr.bf16.gmra.mrb[0].mxu0 %v331
        %v371 = vpop.f32.mrb[0].mxu0
        %v372 = vadd.f32 0.0, %v371
        %v373 = vpop.f32.mrb[0].mxu0
        %v374 = vpop.f32.mrb[0].mxu0
        %v375 = vpop.f32.mrb[0].mxu0
        %376 = vdwg.mxu0
        %377 = vrot.lane.b32.xlu0 %v265, 112
        %v378 = vpop.permute.xlu0 %377
        %379 = vrot.lane.b32.xlu0 %v265, 48
        %v380 = vpop.permute.xlu0 %379
        %v382 = vsel %vm270, %v378, 0
        %v385 = vsel %vm270, %v380, 0
        %387 = vmatprep.subr.bf16.mxu0 0
        %388 = vmatpush1.bf16.xpose.msra.mxu0 %v385
        %389 = vmatprep.subr.bf16.mxu0 0
        %390 = vmatpush1.bf16.xpose.msra.mxu0 0
        %391 = vmatprep.subr.bf16.mxu0 0
        %392 = vmatpush1.bf16.xpose.msra.mxu0 0
        %393 = vmatprep.subr.bf16.mxu0 0
        %394 = vmatpush1.bf16.xpose.msra.mxu0 0
        %395 = vmatprep.subr.bf16.mxu0 0
        %396 = vmatpush1.bf16.xpose.msra.mxu0 0
        %397 = vmatprep.subr.bf16.mxu0 0
        %398 = vmatpush1.bf16.xpose.msra.mxu0 0
        %399 = vmatprep.subr.bf16.mxu0 0
        %400 = vmatpush1.bf16.xpose.msra.mxu0 0
        %401 = vmatprep.subr.bf16.mxu0 0
        %402 = vmatpush1.bf16.xpose.msra.mxu0 0
        %403 = vmatprep.subr.bf16.mxu0 0
        %404 = vmatpush1.bf16.xpose.msra.mxu0 0
        %405 = vmatprep.subr.bf16.mxu0 0
        %406 = vmatpush1.bf16.xpose.msra.mxu0 0
        %407 = vmatprep.subr.bf16.mxu0 0
        %408 = vmatpush1.bf16.xpose.msra.mxu0 0
        %409 = vmatprep.subr.bf16.mxu0 0
        %410 = vmatpush1.bf16.xpose.msra.mxu0 0
        %411 = vmatprep.subr.bf16.mxu0 0
        %412 = vmatpush1.bf16.xpose.msra.mxu0 0
        %413 = vmatprep.subr.bf16.mxu0 0
        %414 = vmatpush1.bf16.xpose.msra.mxu0 0
        %415 = vmatprep.subr.bf16.mxu0 0
        %416 = vmatpush1.bf16.xpose.msra.mxu0 0
        %417 = vmatprep.subr.bf16.mxu0 0
        %418 = vmatpush1.bf16.xpose.msra.mxu0 0
        %419 = vmatprep.mubr.bf16.mxu0 0
        %420 = vmatmul.mubr.bf16.gmra.mrb[0].mxu0 %v382
        %v421 = vpop.f32.mrb[0].mxu0
        %v422 = vadd.f32 0.0, %v421
        %v423 = vpop.f32.mrb[0].mxu0
        %v424 = vpop.f32.mrb[0].mxu0
        %v425 = vpop.f32.mrb[0].mxu0
        %426 = vdwg.mxu0
        %v427 = vsel %vm317, %v422, -inf
        %428 = vmax.xlane.f32.xlu0 %v427
        %v429 = vpop.xlane.xlu0 %428
        %v430 = vsub.f32 %v422, %v429
        %v431 = vmul.f32 %v430, 1.442695
        %v432 = vpow.pop %v431
        %v433 = vsel %vm317, %v432, 0.0
        %434 = vadd.xlane.f32.xlu0 %v433
        %v435 = vpop.xlane.xlu0 %434
        %v436 = vrcp.pop %v435
        %v437 = vmul.f32 %v432, %v436
        %v438 = vpack.c.bf16 %v437, %v437
        %440 = vrot.lane.b32.xlu0 %v266, 112
        %v441 = vpop.permute.xlu0 %440
        %v443 = vsel %vm317, %v438, 0
        %v446 = vsel %vm333, %v441, 0
        %448 = vmatprep.subr.bf16.mxu0 0
        %449 = vmatpush1.bf16.msra.mxu0 %v446
        %450 = vmatprep.subr.bf16.mxu0 0
        %451 = vmatpush1.bf16.msra.mxu0 0
        %452 = vmatprep.subr.bf16.mxu0 0
        %453 = vmatpush1.bf16.msra.mxu0 0
        %454 = vmatprep.subr.bf16.mxu0 0
        %455 = vmatpush1.bf16.msra.mxu0 0
        %456 = vmatprep.subr.bf16.mxu0 0
        %457 = vmatpush1.bf16.msra.mxu0 0
        %458 = vmatprep.subr.bf16.mxu0 0
        %459 = vmatpush1.bf16.msra.mxu0 0
        %460 = vmatprep.subr.bf16.mxu0 0
        %461 = vmatpush1.bf16.msra.mxu0 0
        %462 = vmatprep.subr.bf16.mxu0 0
        %463 = vmatpush1.bf16.msra.mxu0 0
        %464 = vmatprep.subr.bf16.mxu0 0
        %465 = vmatpush1.bf16.msra.mxu0 0
        %466 = vmatprep.subr.bf16.mxu0 0
        %467 = vmatpush1.bf16.msra.mxu0 0
        %468 = vmatprep.subr.bf16.mxu0 0
        %469 = vmatpush1.bf16.msra.mxu0 0
        %470 = vmatprep.subr.bf16.mxu0 0
        %471 = vmatpush1.bf16.msra.mxu0 0
        %472 = vmatprep.subr.bf16.mxu0 0
        %473 = vmatpush1.bf16.msra.mxu0 0
        %474 = vmatprep.subr.bf16.mxu0 0
        %475 = vmatpush1.bf16.msra.mxu0 0
        %476 = vmatprep.subr.bf16.mxu0 0
        %477 = vmatpush1.bf16.msra.mxu0 0
        %478 = vmatprep.subr.bf16.mxu0 0
        %479 = vmatpush1.bf16.msra.mxu0 0
        %480 = vmatprep.mubr.bf16.mxu0 0
        %481 = vmatmul.mubr.bf16.gmra.mrb[0].mxu0 %v443
        %v482 = vpop.f32.mrb[0].mxu0
        %v483 = vadd.f32 0.0, %v482
        %v484 = vpop.f32.mrb[0].mxu0
        %v485 = vpop.f32.mrb[0].mxu0
        %v486 = vpop.f32.mrb[0].mxu0
        %487 = vdwg.mxu0
        %488 = vrot.lane.b32.xlu0 %v265, 96
        %v489 = vpop.permute.xlu0 %488
        %490 = vrot.lane.b32.xlu0 %v265, 32
        %v491 = vpop.permute.xlu0 %490
        %v493 = vsel %vm270, %v489, 0
        %v496 = vsel %vm270, %v491, 0
        %498 = vmatprep.subr.bf16.mxu0 0
        %499 = vmatpush1.bf16.xpose.msra.mxu0 %v496
        %500 = vmatprep.subr.bf16.mxu0 0
        %501 = vmatpush1.bf16.xpose.msra.mxu0 0
        %502 = vmatprep.subr.bf16.mxu0 0
        %503 = vmatpush1.bf16.xpose.msra.mxu0 0
        %504 = vmatprep.subr.bf16.mxu0 0
        %505 = vmatpush1.bf16.xpose.msra.mxu0 0
        %506 = vmatprep.subr.bf16.mxu0 0
        %507 = vmatpush1.bf16.xpose.msra.mxu0 0
        %508 = vmatprep.subr.bf16.mxu0 0
        %509 = vmatpush1.bf16.xpose.msra.mxu0 0
        %510 = vmatprep.subr.bf16.mxu0 0
        %511 = vmatpush1.bf16.xpose.msra.mxu0 0
        %512 = vmatprep.subr.bf16.mxu0 0
        %513 = vmatpush1.bf16.xpose.msra.mxu0 0
        %514 = vmatprep.subr.bf16.mxu0 0
        %515 = vmatpush1.bf16.xpose.msra.mxu0 0
        %516 = vmatprep.subr.bf16.mxu0 0
        %517 = vmatpush1.bf16.xpose.msra.mxu0 0
        %518 = vmatprep.subr.bf16.mxu0 0
        %519 = vmatpush1.bf16.xpose.msra.mxu0 0
        %520 = vmatprep.subr.bf16.mxu0 0
        %521 = vmatpush1.bf16.xpose.msra.mxu0 0
        %522 = vmatprep.subr.bf16.mxu0 0
        %523 = vmatpush1.bf16.xpose.msra.mxu0 0
        %524 = vmatprep.subr.bf16.mxu0 0
        %525 = vmatpush1.bf16.xpose.msra.mxu0 0
        %526 = vmatprep.subr.bf16.mxu0 0
        %527 = vmatpush1.bf16.xpose.msra.mxu0 0
        %528 = vmatprep.subr.bf16.mxu0 0
        %529 = vmatpush1.bf16.xpose.msra.mxu0 0
        %530 = vmatprep.mubr.bf16.mxu0 0
        %531 = vmatmul.mubr.bf16.gmra.mrb[0].mxu0 %v493
        %v532 = vpop.f32.mrb[0].mxu0
        %v533 = vadd.f32 0.0, %v532
        %v534 = vpop.f32.mrb[0].mxu0
        %v535 = vpop.f32.mrb[0].mxu0
        %v536 = vpop.f32.mrb[0].mxu0
        %537 = vdwg.mxu0
        %v538 = vsel %vm317, %v533, -inf
        %539 = vmax.xlane.f32.xlu0 %v538
        %v540 = vpop.xlane.xlu0 %539
        %v541 = vsub.f32 %v533, %v540
        %v542 = vmul.f32 %v541, 1.442695
        %v543 = vpow.pop %v542
        %v544 = vsel %vm317, %v543, 0.0
        %545 = vadd.xlane.f32.xlu0 %v544
        %v546 = vpop.xlane.xlu0 %545
        %v547 = vrcp.pop %v546
        %v548 = vmul.f32 %v543, %v547
        %v549 = vpack.c.bf16 %v548, %v548
        %550 = vrot.lane.b32.xlu0 %v266, 96
        %v551 = vpop.permute.xlu0 %550
        %v553 = vsel %vm317, %v549, 0
        %v556 = vsel %vm333, %v551, 0
        %558 = vmatprep.subr.bf16.mxu0 0
        %559 = vmatpush1.bf16.msra.mxu0 %v556
        %560 = vmatprep.subr.bf16.mxu0 0
        %561 = vmatpush1.bf16.msra.mxu0 0
        %562 = vmatprep.subr.bf16.mxu0 0
        %563 = vmatpush1.bf16.msra.mxu0 0
        %564 = vmatprep.subr.bf16.mxu0 0
        %565 = vmatpush1.bf16.msra.mxu0 0
        %566 = vmatprep.subr.bf16.mxu0 0
        %567 = vmatpush1.bf16.msra.mxu0 0
        %568 = vmatprep.subr.bf16.mxu0 0
        %569 = vmatpush1.bf16.msra.mxu0 0
        %570 = vmatprep.subr.bf16.mxu0 0
        %571 = vmatpush1.bf16.msra.mxu0 0
        %572 = vmatprep.subr.bf16.mxu0 0
        %573 = vmatpush1.bf16.msra.mxu0 0
        %574 = vmatprep.subr.bf16.mxu0 0
        %575 = vmatpush1.bf16.msra.mxu0 0
        %576 = vmatprep.subr.bf16.mxu0 0
        %577 = vmatpush1.bf16.msra.mxu0 0
        %578 = vmatprep.subr.bf16.mxu0 0
        %579 = vmatpush1.bf16.msra.mxu0 0
        %580 = vmatprep.subr.bf16.mxu0 0
        %581 = vmatpush1.bf16.msra.mxu0 0
        %582 = vmatprep.subr.bf16.mxu0 0
        %583 = vmatpush1.bf16.msra.mxu0 0
        %584 = vmatprep.subr.bf16.mxu0 0
        %585 = vmatpush1.bf16.msra.mxu0 0
        %586 = vmatprep.subr.bf16.mxu0 0
        %587 = vmatpush1.bf16.msra.mxu0 0
        %588 = vmatprep.subr.bf16.mxu0 0
        %589 = vmatpush1.bf16.msra.mxu0 0
        %590 = vmatprep.mubr.bf16.mxu0 0
        %591 = vmatmul.mubr.bf16.gmra.mrb[0].mxu0 %v553
        %v592 = vpop.f32.mrb[0].mxu0
        %v593 = vadd.f32 0.0, %v592
        %v594 = vpop.f32.mrb[0].mxu0
        %v595 = vpop.f32.mrb[0].mxu0
        %v596 = vpop.f32.mrb[0].mxu0
        %597 = vdwg.mxu0
        %598 = vrot.lane.b32.xlu0 %v265, 80
        %v599 = vpop.permute.xlu0 %598
        %600 = vrot.lane.b32.xlu0 %v265, 16
        %v601 = vpop.permute.xlu0 %600
        %v603 = vsel %vm270, %v599, 0
        %v606 = vsel %vm270, %v601, 0
        %608 = vmatprep.subr.bf16.mxu0 0
        %609 = vmatpush1.bf16.xpose.msra.mxu0 %v606
        %610 = vmatprep.subr.bf16.mxu0 0
        %611 = vmatpush1.bf16.xpose.msra.mxu0 0
        %612 = vmatprep.subr.bf16.mxu0 0
        %613 = vmatpush1.bf16.xpose.msra.mxu0 0
        %614 = vmatprep.subr.bf16.mxu0 0
        %615 = vmatpush1.bf16.xpose.msra.mxu0 0
        %616 = vmatprep.subr.bf16.mxu0 0
        %617 = vmatpush1.bf16.xpose.msra.mxu0 0
        %618 = vmatprep.subr.bf16.mxu0 0
        %619 = vmatpush1.bf16.xpose.msra.mxu0 0
        %620 = vmatprep.subr.bf16.mxu0 0
        %621 = vmatpush1.bf16.xpose.msra.mxu0 0
        %622 = vmatprep.subr.bf16.mxu0 0
        %623 = vmatpush1.bf16.xpose.msra.mxu0 0
        %624 = vmatprep.subr.bf16.mxu0 0
        %625 = vmatpush1.bf16.xpose.msra.mxu0 0
        %626 = vmatprep.subr.bf16.mxu0 0
        %627 = vmatpush1.bf16.xpose.msra.mxu0 0
        %628 = vmatprep.subr.bf16.mxu0 0
        %629 = vmatpush1.bf16.xpose.msra.mxu0 0
        %630 = vmatprep.subr.bf16.mxu0 0
        %631 = vmatpush1.bf16.xpose.msra.mxu0 0
        %632 = vmatprep.subr.bf16.mxu0 0
        %633 = vmatpush1.bf16.xpose.msra.mxu0 0
        %634 = vmatprep.subr.bf16.mxu0 0
        %635 = vmatpush1.bf16.xpose.msra.mxu0 0
        %636 = vmatprep.subr.bf16.mxu0 0
        %637 = vmatpush1.bf16.xpose.msra.mxu0 0
        %638 = vmatprep.subr.bf16.mxu0 0
        %639 = vmatpush1.bf16.xpose.msra.mxu0 0
        %640 = vmatprep.mubr.bf16.mxu0 0
        %641 = vmatmul.mubr.bf16.gmra.mrb[0].mxu0 %v603
        %v642 = vpop.f32.mrb[0].mxu0
        %v643 = vadd.f32 0.0, %v642
        %v644 = vpop.f32.mrb[0].mxu0
        %v645 = vpop.f32.mrb[0].mxu0
        %v646 = vpop.f32.mrb[0].mxu0
        %647 = vdwg.mxu0
        %v648 = vsel %vm317, %v643, -inf
        %649 = vmax.xlane.f32.xlu0 %v648
        %v650 = vpop.xlane.xlu0 %649
        %v651 = vsub.f32 %v643, %v650
        %v652 = vmul.f32 %v651, 1.442695
        %v653 = vpow.pop %v652
        %v654 = vsel %vm317, %v653, 0.0
        %655 = vadd.xlane.f32.xlu0 %v654
        %v656 = vpop.xlane.xlu0 %655
        %v657 = vrcp.pop %v656
        %v658 = vmul.f32 %v653, %v657
        %v659 = vpack.c.bf16 %v658, %v658
        %660 = vrot.lane.b32.xlu0 %v266, 80
        %v661 = vpop.permute.xlu0 %660
        %v663 = vsel %vm317, %v659, 0
        %v666 = vsel %vm333, %v661, 0
        %668 = vmatprep.subr.bf16.mxu0 0
        %669 = vmatpush1.bf16.msra.mxu0 %v666
        %670 = vmatprep.subr.bf16.mxu0 0
        %671 = vmatpush1.bf16.msra.mxu0 0
        %672 = vmatprep.subr.bf16.mxu0 0
        %673 = vmatpush1.bf16.msra.mxu0 0
        %674 = vmatprep.subr.bf16.mxu0 0
        %675 = vmatpush1.bf16.msra.mxu0 0
        %676 = vmatprep.subr.bf16.mxu0 0
        %677 = vmatpush1.bf16.msra.mxu0 0
        %678 = vmatprep.subr.bf16.mxu0 0
        %679 = vmatpush1.bf16.msra.mxu0 0
        %680 = vmatprep.subr.bf16.mxu0 0
        %681 = vmatpush1.bf16.msra.mxu0 0
        %682 = vmatprep.subr.bf16.mxu0 0
        %683 = vmatpush1.bf16.msra.mxu0 0
        %684 = vmatprep.subr.bf16.mxu0 0
        %685 = vmatpush1.bf16.msra.mxu0 0
        %686 = vmatprep.subr.bf16.mxu0 0
        %687 = vmatpush1.bf16.msra.mxu0 0
        %688 = vmatprep.subr.bf16.mxu0 0
        %689 = vmatpush1.bf16.msra.mxu0 0
        %690 = vmatprep.subr.bf16.mxu0 0
        %691 = vmatpush1.bf16.msra.mxu0 0
        %692 = vmatprep.subr.bf16.mxu0 0
        %693 = vmatpush1.bf16.msra.mxu0 0
        %694 = vmatprep.subr.bf16.mxu0 0
        %695 = vmatpush1.bf16.msra.mxu0 0
        %696 = vmatprep.subr.bf16.mxu0 0
        %697 = vmatpush1.bf16.msra.mxu0 0
        %698 = vmatprep.subr.bf16.mxu0 0
        %699 = vmatpush1.bf16.msra.mxu0 0
        %700 = vmatprep.mubr.bf16.mxu0 0
        %701 = vmatmul.mubr.bf16.gmra.mrb[0].mxu0 %v663
        %v702 = vpop.f32.mrb[0].mxu0
        %v703 = vadd.f32 0.0, %v702
        %v704 = vpop.f32.mrb[0].mxu0
        %v705 = vpop.f32.mrb[0].mxu0
        %v706 = vpop.f32.mrb[0].mxu0
        %707 = vdwg.mxu0
        %709 = vrot.lane.b32.xlu0 %v483, 16
        %v710 = vpop.permute.xlu0 %709
        %713 = vrot.lane.b32.xlu0 %v593, 32
        %v714 = vpop.permute.xlu0 %713
        %717 = vrot.lane.b32.xlu0 %v703, 48
        %v718 = vpop.permute.xlu0 %717
        %v720 = vsel %vm270, %v372, %v710
        %v721 = vsel %vm220, %v720, %v714
        %vm722 = vcmask 392192
        %v723 = vsel %vm722, %v721, %v718
        %v724 = vpack.c.bf16 %v723, %v723
        %v725 = vld [vmem:[%s2] sm:$0xf]
        %v726 = vld [vmem:[%s2 + $0x4] sm:$0xf]
        %v727 = vld [vmem:[%s2 + $0x8] sm:$0xf]
        %v728 = vld [vmem:[%s2 + $0xc] sm:$0xf]
        %v729 = vld [vmem:[%s2 + $0x10] sm:$0xf]
        %v730 = vld [vmem:[%s2 + $0x14] sm:$0xf]
        %v731 = vld [vmem:[%s2 + $0x18] sm:$0xf]
        %v732 = vld [vmem:[%s2 + $0x1c] sm:$0xf]
        %v733 = vld [vmem:[%s3] sm:$0x1]
        %v735 = vlaneseq
        %v736 = vshrl.u32 %v735, 7
        %v737 = vsub.s32 0, %v736
        %v738 = vrot.slane %v733, %v737
        %v748 = vunpack.c.l.b16 %v725
        %v749 = vunpack.c.l.b16 %v726
        %v750 = vunpack.c.l.b16 %v727
        %v751 = vunpack.c.l.b16 %v728
        %v752 = vunpack.c.l.b16 %v729
        %v753 = vunpack.c.l.b16 %v730
        %v754 = vunpack.c.l.b16 %v731
        %v755 = vunpack.c.l.b16 %v732
        %v756 = vpack.c.b16 %v749, %v748
        %v757 = vpack.c.b16 %v751, %v750
        %v758 = vpack.c.b16 %v753, %v752
        %v759 = vpack.c.b16 %v755, %v754
        %vm764 = vcmask 523264
        %v766 = vsel %vm764, %v724, 0
        %768 = vmatprep.subr.bf16.mxu0 0
        %769 = vmatpush1.bf16.msra.mxu0 %v756
        %770 = vmatprep.subr.bf16.mxu0 0
        %771 = vmatpush1.bf16.msra.mxu0 %v757
        %772 = vmatprep.subr.bf16.mxu0 0
        %773 = vmatpush1.bf16.msra.mxu0 %v758
        %774 = vmatprep.subr.bf16.mxu0 0
        %775 = vmatpush1.bf16.msra.mxu0 %v759
        %776 = vmatprep.subr.bf16.mxu0 0
        %777 = vmatpush1.bf16.msra.mxu0 0
        %778 = vmatprep.subr.bf16.mxu0 0
        %779 = vmatpush1.bf16.msra.mxu0 0
        %780 = vmatprep.subr.bf16.mxu0 0
        %781 = vmatpush1.bf16.msra.mxu0 0
        %782 = vmatprep.subr.bf16.mxu0 0
        %783 = vmatpush1.bf16.msra.mxu0 0
        %784 = vmatprep.subr.bf16.mxu0 0
        %785 = vmatpush1.bf16.msra.mxu0 0
        %786 = vmatprep.subr.bf16.mxu0 0
        %787 = vmatpush1.bf16.msra.mxu0 0
        %788 = vmatprep.subr.bf16.mxu0 0
        %789 = vmatpush1.bf16.msra.mxu0 0
        %790 = vmatprep.subr.bf16.mxu0 0
        %791 = vmatpush1.bf16.msra.mxu0 0
        %792 = vmatprep.subr.bf16.mxu0 0
        %793 = vmatpush1.bf16.msra.mxu0 0
        %794 = vmatprep.subr.bf16.mxu0 0
        %795 = vmatpush1.bf16.msra.mxu0 0
        %796 = vmatprep.subr.bf16.mxu0 0
        %797 = vmatpush1.bf16.msra.mxu0 0
        %798 = vmatprep.subr.bf16.mxu0 0
        %799 = vmatpush1.bf16.msra.mxu0 0
        %800 = vmatprep.mubr.bf16.mxu0 0
        %801 = vmatmul.mubr.bf16.gmra.mrb[0].mxu0 %v766
        %v802 = vpop.f32.mrb[0].mxu0
        %v803 = vadd.f32 %v738, %v802
        %v804 = vpop.f32.mrb[0].mxu0
        %v805 = vpop.f32.mrb[0].mxu0
        %v806 = vpop.f32.mrb[0].mxu0
        %807 = vdwg.mxu0
        %808 = vst.msk [vmem:[%s188] sm:$0xff] %vm220, %v803
        %s809 = sand.u32 %s115, 1
        %s810 = scalar_lea.sflag [#allocation3], %s809
        %s811 = sand.u32 %s115, 1
        %s812 = smul.addr %s811, 8
        %s813 = scalar_lea.vmem [#allocation2], %s812
        // Predicated region
        $region37: #{tpu_custom_call.1} parent=35 // pred_check
          %p814 = pneg %p125
        $region38: #{tpu_custom_call.1} parent=35 // pred_check_branch
          %816 = sbr.rel (%p814) target = $region40
        $region39: #{tpu_custom_call.1} parent=35 // pred_region
          %s818 = ssub.s32 128, 128
          %819 = vsyncadd %s810, %s818
          %s820 = smul.addr %s18, 128
          %s821 = scalar_lea.hbm %s4, %s820
          %s823 = sshll.u32 %s813, 4
          %s824 = int_to_ptr.vmem [resolvable:$true] %s823
          %826 = dma.vmem_to_hbm [thread:$0]  %s824, 128, %s821, %s810
        $region40: #{tpu_custom_call.1} parent=35 // pred_fallthru
          _
      $region36: #{tpu_custom_call.1} parent=5 // pred_fallthru
        _
      %p827 = scmp.le.s32.totalorder 2, %s13
      // Predicated region
      $region41: #{tpu_custom_call.1} parent=5 // pred_check
        %p828 = pneg %p827
      $region42: #{tpu_custom_call.1} parent=5 // pred_check_branch
        %830 = sbr.rel (%p828) target = $region44
      $region43: #{tpu_custom_call.1} parent=5 // pred_region
        %s831 = ssub.s32 %s13, 2
        // Predicated region
        $region45: #{tpu_custom_call.1} parent=43 // pred_check
          %p832 = pneg %p131
        $region46: #{tpu_custom_call.1} parent=43 // pred_check_branch
          %834 = sbr.rel (%p832) target = $region48
        $region47: #{tpu_custom_call.1} parent=43 // pred_region
          %s835 = sand.u32 %s116, 1
          %s836 = scalar_lea.sflag [#allocation3], %s835
          %s837 = sand.u32 %s116, 1
          %s838 = smul.addr %s837, 8
          %s839 = scalar_lea.vmem [#allocation2], %s838
          %840 = dma.done %s836, 128
        $region48: #{tpu_custom_call.1} parent=43 // pred_fallthru
          _
      $region44: #{tpu_custom_call.1} parent=5 // pred_fallthru
        _
    $region6: #{tpu_custom_call.1} parent=1 // loop_footer
      %s17 = sadd.s32 1, %s13
    $region7: #{tpu_custom_call.1} parent=1 // loop_footer_branch
      %12 = sbr.rel target = $region3
    $region8: #{tpu_custom_call.1} parent=1 // loop_exit
      _
    %841 = vsyncpa [#allocation3], 1
    %s842 = scalar_lea.sflag [#allocation3], 1
    %843 = vsyncpa %s842, 1

</llo_original>
